<compile_context>
chip_gen: v5e
topology: v5e:2x2
jax: 0.10.0
libtpu: 0.0.40
codegen_flags: <defaults>
</compile_context>

<pallas_src>
import functools
import math

import jax
import jax.numpy as jnp
from jax import lax
from jax.experimental import pallas as pl
from jax.experimental.pallas import tpu as pltpu

_MASK = -1e30   # exp(_MASK - max) underflows to exactly 0.0 in f32


def _attention_kernel(x_full_ref, x_tile_ref, wqt_ref, bq_ref, wkvt_ref,
                      bkv_ref, out_ref, attn_ref, q_scratch, *,
                      indicator, inv_scale, true_n, padded_n, d_pad, tile_j,
                      compute_dtype):
    """Grid = (batch, key_tile).  Refs (batch dim squeezed):
         x_full_ref : (padded_n, d_pad)   full sequence (for Q)
         x_tile_ref : (tile_j,  d_pad)    rows of this key tile (for K/V)
         wqt_ref    : (d_pad, d_pad)      Wq^T           bq_ref : (1, d_pad)
         wkvt_ref   : (d_pad, 2*d_pad)    [Wk^T | Wv^T]  bkv_ref: (1, 2*d_pad)
         out_ref    : (padded_n, d_pad)   accumulated over the key axis
         attn_ref   : (padded_n, tile_j)  this tile's attention-weight columns
         q_scratch  : (padded_n, d_pad)   f32, pre-scaled Q (resident over j)
    """
    j = pl.program_id(1)

    # ---- once per sequence: project Q with 1/sqrt(D) folded in, zero the
    #      resident output accumulator.
    @pl.when(j == 0)
    def _():
        q = jnp.dot(x_full_ref[...], wqt_ref[...],
                    preferred_element_type=jnp.float32) + bq_ref[...]
        q_scratch[...] = q * inv_scale
        out_ref[...] = jnp.zeros_like(out_ref)

    # ---- fused K/V projection for this key tile (single 2*D-wide MXU pass).
    kv = jnp.dot(x_tile_ref[...], wkvt_ref[...],
                 preferred_element_type=jnp.float32) + bkv_ref[...]
    k = kv[:, :d_pad]                 # (tile_j, d_pad), tile-aligned slice
    v = kv[:, d_pad:]

    # ---- similarity slab: (padded_n, tile_j) = (Q/sqrt(D)) @ K^T
    sim = lax.dot_general(q_scratch[...].astype(compute_dtype),
                          k.astype(compute_dtype),
                          (((1,), (1,)), ((), ())),
                          preferred_element_type=jnp.float32)
    if indicator == 0:
        # torch: (1 - Q.K)/sqrt(D)  ==  1/sqrt(D) - (Q/sqrt(D)).K
        sim = inv_scale - sim

    # ---- mask padded query rows so the dim=0 softmax only sees real rows.
    if padded_n != true_n:
        row_id = lax.broadcasted_iota(jnp.int32, sim.shape, 0)
        sim = jnp.where(row_id < true_n, sim, _MASK)

    # ---- exact softmax over axis 0 (the whole axis is resident in the slab).
    m = jnp.max(sim, axis=0, keepdims=True)
    e = jnp.exp(sim - m)
    denom_inv = pl.reciprocal(jnp.sum(e, axis=0, keepdims=True), approx=False)
    attn = e * denom_inv
    attn_ref[...] = attn

    # ---- accumulate output; padded key rows of V must not contribute.
    if padded_n != true_n:
        key_id = lax.broadcasted_iota(jnp.int32, v.shape, 0) + j * tile_j
        v = jnp.where(key_id < true_n, v, 0.0)
    out_ref[...] += jnp.dot(attn.astype(compute_dtype), v.astype(compute_dtype),
                            preferred_element_type=jnp.float32)


def _round_up(x, m):
    return ((x + m - 1) // m) * m


def _pick_key_tile(padded_n):
    for cand in (512, 256, 128):
        if padded_n % cand == 0:
            return cand
    return 128   # padded_n is always a multiple of 128


def single_head_self_attention_batched(sent_mats, params, indicator, *,
                                        use_bf16_matmul=False):
    """Batched forward.  sent_mats: (B, N, D) float32; indicator in {0, 1}.
    Returns (attention_output (B, N, D), attention_weight (B, N, N)), f32."""
    if indicator not in (0, 1):
        raise ValueError("indicator must be 0 or 1 (matches PyTorch control flow)")
    B, N, D = sent_mats.shape
    n_pad = _round_up(N, 128)          # lane-dense attn columns + MXU fill
    d_pad = _round_up(D, 128)          # lane-dense out columns + MXU fill
    tile_j = _pick_key_tile(n_pad)
    num_j = n_pad // tile_j
    compute_dtype = jnp.bfloat16 if use_bf16_matmul else jnp.float32

    # glue: nn.Linear weights as (in, out); zero-pad to TPU-friendly shapes and
    # fuse the K / V projections into one (d_pad, 2*d_pad) matrix.
    def pad_wt(w):                      # (out, in) -> (in_pad, out_pad)
        return jnp.pad(w.T.astype(jnp.float32),
                       ((0, d_pad - D), (0, d_pad - D)))

    def pad_b(b):                       # (D,) -> (1, d_pad)
        return jnp.pad(b.astype(jnp.float32), (0, d_pad - D)).reshape(1, d_pad)

    wqt = pad_wt(params["wq"]).astype(compute_dtype)
    wkvt = jnp.concatenate([pad_wt(params["wk"]), pad_wt(params["wv"])],
                           axis=1).astype(compute_dtype)
    bq = pad_b(params["bq"])
    bkv = jnp.concatenate([pad_b(params["bk"]), pad_b(params["bv"])], axis=1)

    x = jnp.pad(sent_mats.astype(jnp.float32),
                ((0, 0), (0, n_pad - N), (0, d_pad - D))).astype(compute_dtype)

    kernel = functools.partial(
        _attention_kernel,
        indicator=indicator,
        inv_scale=1.0 / math.sqrt(D),   # scale uses the TRUE in_dim, not d_pad
        true_n=N, padded_n=n_pad, d_pad=d_pad, tile_j=tile_j,
        compute_dtype=compute_dtype)

    out_p, attn_p = pl.pallas_call(
        kernel,
        out_shape=(
            jax.ShapeDtypeStruct((B, n_pad, d_pad), jnp.float32),  # output
            jax.ShapeDtypeStruct((B, n_pad, n_pad), jnp.float32),  # attn weights
        ),
        grid=(B, num_j),
        in_specs=[
            pl.BlockSpec((None, n_pad, d_pad), lambda b, j: (b, 0, 0)),   # x (full, Q)
            pl.BlockSpec((None, tile_j, d_pad), lambda b, j: (b, j, 0)),  # x (key tile)
            pl.BlockSpec((d_pad, d_pad), lambda b, j: (0, 0)),            # Wq^T
            pl.BlockSpec((1, d_pad), lambda b, j: (0, 0)),                # bq
            pl.BlockSpec((d_pad, 2 * d_pad), lambda b, j: (0, 0)),        # [Wk^T|Wv^T]
            pl.BlockSpec((1, 2 * d_pad), lambda b, j: (0, 0)),            # [bk|bv]
        ],
        out_specs=(
            pl.BlockSpec((None, n_pad, d_pad), lambda b, j: (b, 0, 0)),   # accumulated
            pl.BlockSpec((None, n_pad, tile_j), lambda b, j: (b, 0, j)),  # lane-dense
        ),
        scratch_shapes=[pltpu.VMEM((n_pad, d_pad), jnp.float32)],         # scaled Q
        compiler_params=pltpu.CompilerParams(
            dimension_semantics=("parallel", "arbitrary")),
    )(x, x, wqt, bq, wkvt, bkv)

    # strip the padding back off
    return out_p[:, :N, :D], attn_p[:, :N, :N]


def single_head_self_attention(sent_mat, params, indicator, *,
                               use_bf16_matmul=False):
    """Single-sequence forward matching the PyTorch module: (N, D) input."""
    out, attn = single_head_self_attention_batched(
        sent_mat[None], params, indicator, use_bf16_matmul=use_bf16_matmul)
    return out[0], attn[0]


def init_params(key, in_dim):
    """Deterministic init mirroring nn.Linear(in_dim, in_dim) x3: W is (out, in)."""
    ks = jax.random.split(key, 6)
    bound = 1.0 / jnp.sqrt(jnp.float32(in_dim))
    u = lambda k, shape: jax.random.uniform(k, shape, jnp.float32, -bound, bound)
    return {
        "wq": u(ks[0], (in_dim, in_dim)), "bq": u(ks[1], (in_dim,)),
        "wk": u(ks[2], (in_dim, in_dim)), "bk": u(ks[3], (in_dim,)),
        "wv": u(ks[4], (in_dim, in_dim)), "bv": u(ks[5], (in_dim,)),
    }


def _reference(sent_mat, params, indicator):
    """Pure-JAX reference with full-f32 matmuls."""
    hp = lax.Precision.HIGHEST
    q = jnp.dot(sent_mat, params["wq"].T, precision=hp) + params["bq"]
    k = jnp.dot(sent_mat, params["wk"].T, precision=hp) + params["bk"]
    v = jnp.dot(sent_mat, params["wv"].T, precision=hp) + params["bv"]
    sim = jnp.dot(q, k.T, precision=hp)
    if indicator == 0:
        sim = 1.0 - sim
    sim = sim / jnp.sqrt(jnp.float32(sent_mat.shape[1]))
    w = jax.nn.softmax(sim, axis=0)
    return jnp.dot(w, v, precision=hp), w


if __name__ == "__main__":
    key = jax.random.PRNGKey(0)
    k_x1, k_p1, k_x2, k_p2 = jax.random.split(key, 4)

    ok = True

    # 1) Toy, unaligned shape (exercises padding + masking): N=8, D=32.
    N1, D1 = 8, 32
    x1 = jax.random.normal(k_x1, (N1, D1), jnp.float32)
    p1 = init_params(k_p1, D1)
    for indicator in (1, 0):
        out, attn = single_head_self_attention(x1, p1, indicator)
        out, attn = jax.block_until_ready(out), jax.block_until_ready(attn)
        r_out, r_attn = _reference(x1, p1, indicator)
        ok &= bool(jnp.allclose(out, r_out, atol=1e-4, rtol=1e-4))
        ok &= bool(jnp.allclose(attn, r_attn, atol=1e-5, rtol=1e-5))
        ok &= bool(jnp.allclose(attn.sum(axis=0), jnp.ones((N1,)), atol=1e-5))

    # 2) Batched, aligned, multiple key tiles (exercises grid + accumulator):
    #    B=3, N=384 (three 128-wide key tiles), D=128.
    B2, N2, D2 = 3, 384, 128
    x2 = jax.random.normal(k_x2, (B2, N2, D2), jnp.float32)
    p2 = init_params(k_p2, D2)
    out2, attn2 = single_head_self_attention_batched(x2, p2, 1)
    out2, attn2 = jax.block_until_ready(out2), jax.block_until_ready(attn2)
    r_out2, r_attn2 = jax.vmap(lambda xb: _reference(xb, p2, 1))(x2)
    ok &= bool(jnp.allclose(out2, r_out2, atol=5e-4, rtol=5e-4))
    ok &= bool(jnp.allclose(attn2, r_attn2, atol=1e-5, rtol=1e-5))

    # 3) bf16 MXU operands (f32 accumulation, f32 softmax) -- looser tolerance.
    out_b, attn_b = single_head_self_attention(x1, p1, 1, use_bf16_matmul=True)
    out_b = jax.block_until_ready(out_b)
    r_out, r_attn = _reference(x1, p1, 1)
    ok &= bool(jnp.allclose(out_b, r_out, atol=5e-2, rtol=5e-2))
    ok &= bool(jnp.allclose(attn_b, r_attn, atol=5e-2, rtol=5e-2))

    print("KERNEL_OK" if ok else "KERNEL_MISMATCH")
</pallas_src>

<mosaic_0001>
module attributes {stable_mosaic.version = 11 : i64} {
  func.func @_attention_kernel(%arg0: i32, %arg1: i32, %arg2: memref<1x128x128xf32, #tpu.memory_space<vmem>>, %arg3: memref<1x128x128xf32, #tpu.memory_space<vmem>>, %arg4: memref<128x128xf32, #tpu.memory_space<vmem>>, %arg5: memref<1x128xf32, #tpu.memory_space<vmem>>, %arg6: memref<128x256xf32, #tpu.memory_space<vmem>>, %arg7: memref<1x256xf32, #tpu.memory_space<vmem>>, %arg8: memref<1x128x128xf32, #tpu.memory_space<vmem>>, %arg9: memref<1x128x128xf32, #tpu.memory_space<vmem>>, %arg10: memref<128x128xf32, #tpu.memory_space<vmem>>) attributes {dimension_semantics = [#tpu.dimension_semantics<parallel>, #tpu.dimension_semantics<arbitrary>], iteration_bounds = array<i64: 1, 1>, scalar_prefetch = 0 : i64, scratch_operands = 1 : i64, tpu.core_type = #tpu.core_type<tc>, window_params = [{transform_indices = @transform_0, window_bounds = array<i64: 1, 128, 128>}, {transform_indices = @transform_1, window_bounds = array<i64: 1, 128, 128>}, {pipeline_mode = #tpu.pipeline_mode<synchronous>, transform_indices = @transform_2, window_bounds = array<i64: 128, 128>}, {pipeline_mode = #tpu.pipeline_mode<synchronous>, transform_indices = @transform_3, window_bounds = array<i64: 1, 128>}, {pipeline_mode = #tpu.pipeline_mode<synchronous>, transform_indices = @transform_4, window_bounds = array<i64: 128, 256>}, {pipeline_mode = #tpu.pipeline_mode<synchronous>, transform_indices = @transform_5, window_bounds = array<i64: 1, 256>}, {transform_indices = @transform_6, window_bounds = array<i64: 1, 128, 128>}, {transform_indices = @transform_7, window_bounds = array<i64: 1, 128, 128>}]} {
    %c0_i32 = arith.constant 0 : i32
    %0 = arith.cmpi eq, %arg1, %c0_i32 : i32
    %1 = arith.extui %0 : i1 to i32
    %c0_i32_0 = arith.constant 0 : i32
    %2 = arith.cmpi ne, %1, %c0_i32_0 : i32
    scf.if %2 {
      %c0_25 = arith.constant 0 : index
      %c0_26 = arith.constant 0 : index
      %c0_27 = arith.constant 0 : index
      %47 = vector.load %arg2[%c0_25, %c0_26, %c0_27] : memref<1x128x128xf32, #tpu.memory_space<vmem>>, vector<1x128x128xf32>
      %48 = vector.shape_cast %47 : vector<1x128x128xf32> to vector<128x128xf32>
      %c0_28 = arith.constant 0 : index
      %c0_29 = arith.constant 0 : index
      %49 = vector.load %arg4[%c0_28, %c0_29] : memref<128x128xf32, #tpu.memory_space<vmem>>, vector<128x128xf32>
      %cst_30 = arith.constant dense<0.000000e+00> : vector<128x128xf32>
      %50 = tpu.matmul %48, %49, %cst_30 {dimension_numbers = #tpu.dot_dimension_numbers<[1], [0], [0], [1], [0, 0, 1, 1], [], []>} : vector<128x128xf32>, vector<128x128xf32>, vector<128x128xf32> -> vector<128x128xf32>
      %c0_31 = arith.constant 0 : index
      %c0_32 = arith.constant 0 : index
      %51 = vector.load %arg5[%c0_31, %c0_32] : memref<1x128xf32, #tpu.memory_space<vmem>>, vector<1x128xf32>
      %52 = vector.broadcast %51 : vector<1x128xf32> to vector<128x128xf32>
      %53 = arith.addf %50, %52 : vector<128x128xf32>
      %cst_33 = arith.constant 0.176776692 : f32
      %54 = vector.broadcast %cst_33 : f32 to vector<128x128xf32>
      %55 = arith.mulf %53, %54 : vector<128x128xf32>
      %c0_34 = arith.constant 0 : index
      %c0_35 = arith.constant 0 : index
      %56 = vector.load %arg10[%c0_34, %c0_35] : memref<128x128xf32, #tpu.memory_space<vmem>>, vector<128x128xf32>
      tpu.vector_store %arg10[%c0_34, %c0_35], %55 {strides = array<i32>} : memref<128x128xf32, #tpu.memory_space<vmem>>, vector<128x128xf32>,
      %cst_36 = arith.constant 0.000000e+00 : f32
      %57 = vector.broadcast %cst_36 : f32 to vector<128x128xf32>
      %c0_37 = arith.constant 0 : index
      %c0_38 = arith.constant 0 : index
      %c0_39 = arith.constant 0 : index
      %58 = vector.load %arg8[%c0_37, %c0_38, %c0_39] : memref<1x128x128xf32, #tpu.memory_space<vmem>>, vector<1x128x128xf32>
      %59 = vector.shape_cast %58 : vector<1x128x128xf32> to vector<128x128xf32>
      %60 = vector.shape_cast %57 : vector<128x128xf32> to vector<1x128x128xf32>
      tpu.vector_store %arg8[%c0_37, %c0_38, %c0_39], %60 {strides = array<i32>} : memref<1x128x128xf32, #tpu.memory_space<vmem>>, vector<1x128x128xf32>,
    } else {
    }
    %c0 = arith.constant 0 : index
    %c0_1 = arith.constant 0 : index
    %c0_2 = arith.constant 0 : index
    %3 = vector.load %arg3[%c0, %c0_1, %c0_2] : memref<1x128x128xf32, #tpu.memory_space<vmem>>, vector<1x128x128xf32>
    %4 = vector.shape_cast %3 : vector<1x128x128xf32> to vector<128x128xf32>
    %c0_3 = arith.constant 0 : index
    %c0_4 = arith.constant 0 : index
    %5 = vector.load %arg6[%c0_3, %c0_4] : memref<128x256xf32, #tpu.memory_space<vmem>>, vector<128x256xf32>
    %cst = arith.constant dense<0.000000e+00> : vector<128x256xf32>
    %6 = tpu.matmul %4, %5, %cst {dimension_numbers = #tpu.dot_dimension_numbers<[1], [0], [0], [1], [0, 0, 1, 1], [], []>} : vector<128x128xf32>, vector<128x256xf32>, vector<128x256xf32> -> vector<128x256xf32>
    %c0_5 = arith.constant 0 : index
    %c0_6 = arith.constant 0 : index
    %7 = vector.load %arg7[%c0_5, %c0_6] : memref<1x256xf32, #tpu.memory_space<vmem>>, vector<1x256xf32>
    %8 = vector.broadcast %7 : vector<1x256xf32> to vector<128x256xf32>
    %9 = arith.addf %6, %8 : vector<128x256xf32>
    %10 = vector.extract_strided_slice %9 {offsets = [0, 0], sizes = [128, 128], strides = [1, 1]} : vector<128x256xf32> to vector<128x128xf32>
    %11 = vector.extract_strided_slice %9 {offsets = [0, 128], sizes = [128, 128], strides = [1, 1]} : vector<128x256xf32> to vector<128x128xf32>
    %c0_7 = arith.constant 0 : index
    %c0_8 = arith.constant 0 : index
    %12 = vector.load %arg10[%c0_7, %c0_8] : memref<128x128xf32, #tpu.memory_space<vmem>>, vector<128x128xf32>
    %cst_9 = arith.constant dense<0.000000e+00> : vector<128x128xf32>
    %13 = tpu.matmul %12, %10, %cst_9 {dimension_numbers = #tpu.dot_dimension_numbers<[1], [1], [0], [0], [0, 0, 1, 0], [], []>} : vector<128x128xf32>, vector<128x128xf32>, vector<128x128xf32> -> vector<128x128xf32>
    %14 = tpu.iota {dimensions = array<i32: 0>} : vector<128x128xi32>
    %c8_i32 = arith.constant 8 : i32
    %15 = vector.broadcast %c8_i32 : i32 to vector<128x128xi32>
    %16 = arith.cmpi slt, %14, %15 : vector<128x128xi32>
    %cst_10 = arith.constant -1.000000e+30 : f32
    %17 = vector.broadcast %cst_10 : f32 to vector<128x128xf32>
    %18 = arith.select %16, %13, %17 : vector<128x128xi1>, vector<128x128xf32>
    %cst_11 = arith.constant dense<0xFF800000> : vector<128xf32>
    %19 = vector.multi_reduction <maximumf>, %18, %cst_11 [0] : vector<128x128xf32> to vector<128xf32>
    %20 = vector.shape_cast %19 : vector<128xf32> to vector<1x128xf32>
    %21 = vector.broadcast %20 : vector<1x128xf32> to vector<128x128xf32>
    %22 = arith.subf %18, %21 : vector<128x128xf32>
    %23 = math.exp %22 : vector<128x128xf32>
    %cst_12 = arith.constant dense<0.000000e+00> : vector<128xf32>
    %24 = vector.multi_reduction <add>, %23, %cst_12 [0] : vector<128x128xf32> to vector<128xf32>
    %25 = vector.shape_cast %24 : vector<128xf32> to vector<1x128xf32>
    %26 = tpu.reciprocal %25 : vector<1x128xf32> -> vector<1x128xf32>
    %27 = vector.broadcast %26 : vector<1x128xf32> to vector<128x128xf32>
    %28 = arith.mulf %23, %27 : vector<128x128xf32>
    %c0_13 = arith.constant 0 : index
    %c0_14 = arith.constant 0 : index
    %c0_15 = arith.constant 0 : index
    %29 = vector.load %arg9[%c0_13, %c0_14, %c0_15] : memref<1x128x128xf32, #tpu.memory_space<vmem>>, vector<1x128x128xf32>
    %30 = vector.shape_cast %29 : vector<1x128x128xf32> to vector<128x128xf32>
    %31 = vector.shape_cast %28 : vector<128x128xf32> to vector<1x128x128xf32>
    tpu.vector_store %arg9[%c0_13, %c0_14, %c0_15], %31 {strides = array<i32>} : memref<1x128x128xf32, #tpu.memory_space<vmem>>, vector<1x128x128xf32>,
    %32 = tpu.iota {dimensions = array<i32: 0>} : vector<128x128xi32>
    %c128_i32 = arith.constant 128 : i32
    %33 = arith.muli %arg1, %c128_i32 : i32
    %34 = vector.broadcast %33 : i32 to vector<128x128xi32>
    %35 = arith.addi %32, %34 : vector<128x128xi32>
    %c8_i32_16 = arith.constant 8 : i32
    %36 = vector.broadcast %c8_i32_16 : i32 to vector<128x128xi32>
    %37 = arith.cmpi slt, %35, %36 : vector<128x128xi32>
    %cst_17 = arith.constant 0.000000e+00 : f32
    %38 = vector.broadcast %cst_17 : f32 to vector<128x128xf32>
    %39 = arith.select %37, %11, %38 : vector<128x128xi1>, vector<128x128xf32>
    %c0_18 = arith.constant 0 : index
    %c0_19 = arith.constant 0 : index
    %c0_20 = arith.constant 0 : index
    %40 = vector.load %arg8[%c0_18, %c0_19, %c0_20] : memref<1x128x128xf32, #tpu.memory_space<vmem>>, vector<1x128x128xf32>
    %41 = vector.shape_cast %40 : vector<1x128x128xf32> to vector<128x128xf32>
    %cst_21 = arith.constant dense<0.000000e+00> : vector<128x128xf32>
    %42 = tpu.matmul %28, %39, %cst_21 {dimension_numbers = #tpu.dot_dimension_numbers<[1], [0], [0], [1], [0, 0, 1, 1], [], []>} : vector<128x128xf32>, vector<128x128xf32>, vector<128x128xf32> -> vector<128x128xf32>
    %43 = arith.addf %41, %42 : vector<128x128xf32>
    %c0_22 = arith.constant 0 : index
    %c0_23 = arith.constant 0 : index
    %c0_24 = arith.constant 0 : index
    %44 = vector.load %arg8[%c0_22, %c0_23, %c0_24] : memref<1x128x128xf32, #tpu.memory_space<vmem>>, vector<1x128x128xf32>
    %45 = vector.shape_cast %44 : vector<1x128x128xf32> to vector<128x128xf32>
    %46 = vector.shape_cast %43 : vector<128x128xf32> to vector<1x128x128xf32>
    tpu.vector_store %arg8[%c0_22, %c0_23, %c0_24], %46 {strides = array<i32>} : memref<1x128x128xf32, #tpu.memory_space<vmem>>, vector<1x128x128xf32>,
    return
  }
  func.func @transform_0(%arg0: i32, %arg1: i32) -> (i32, i32, i32) {
    %c0_i32 = arith.constant 0 : i32
    %c0_i32_0 = arith.constant 0 : i32
    %c0_i32_1 = arith.constant 0 : i32
    return %arg0, %c0_i32, %c0_i32_0 : i32, i32, i32
  }
  func.func @transform_1(%arg0: i32, %arg1: i32) -> (i32, i32, i32) {
    %c0_i32 = arith.constant 0 : i32
    %c0_i32_0 = arith.constant 0 : i32
    return %arg0, %arg1, %c0_i32 : i32, i32, i32
  }
  func.func @transform_2(%arg0: i32, %arg1: i32) -> (i32, i32) {
    %c0_i32 = arith.constant 0 : i32
    %c0_i32_0 = arith.constant 0 : i32
    %c0_i32_1 = arith.constant 0 : i32
    return %c0_i32, %c0_i32_0 : i32, i32
  }
  func.func @transform_3(%arg0: i32, %arg1: i32) -> (i32, i32) {
    %c0_i32 = arith.constant 0 : i32
    %c0_i32_0 = arith.constant 0 : i32
    %c0_i32_1 = arith.constant 0 : i32
    return %c0_i32, %c0_i32_0 : i32, i32
  }
  func.func @transform_4(%arg0: i32, %arg1: i32) -> (i32, i32) {
    %c0_i32 = arith.constant 0 : i32
    %c0_i32_0 = arith.constant 0 : i32
    %c0_i32_1 = arith.constant 0 : i32
    return %c0_i32, %c0_i32_0 : i32, i32
  }
  func.func @transform_5(%arg0: i32, %arg1: i32) -> (i32, i32) {
    %c0_i32 = arith.constant 0 : i32
    %c0_i32_0 = arith.constant 0 : i32
    %c0_i32_1 = arith.constant 0 : i32
    return %c0_i32, %c0_i32_0 : i32, i32
  }
  func.func @transform_6(%arg0: i32, %arg1: i32) -> (i32, i32, i32) {
    %c0_i32 = arith.constant 0 : i32
    %c0_i32_0 = arith.constant 0 : i32
    %c0_i32_1 = arith.constant 0 : i32
    return %arg0, %c0_i32, %c0_i32_0 : i32, i32, i32
  }
  func.func @transform_7(%arg0: i32, %arg1: i32) -> (i32, i32, i32) {
    %c0_i32 = arith.constant 0 : i32
    %c0_i32_0 = arith.constant 0 : i32
    return %arg0, %c0_i32, %arg1 : i32, i32, i32
  }
}

</mosaic_0001>

<llo_original>
// kernel: tpu_custom_call.1
$region0: #{tpu_custom_call.1}
  #allocation0 [shape = 'u32[]', space=smem, size = 0x4, offset = 0x4, fixed_abs, tag = 'smem constant byte address 0x4 - core index']
  #allocation1 [shape = 'u32[72,128]{1,0:T(1,128)}', space=vmem, size = 0x9000, scoped, tag = 'internal scratch']
  #allocation2 [shape = 'f32[128,128]{1,0:T(8,128)}', space=vmem, size = 0x10000, scoped, tag = 'scratch operand']
  %s0 = inlined_call_operand.hbm [shape: f32[1,128,128], index: 0, kind: input, shape index: {}]
  %s1 = inlined_call_operand.hbm [shape: f32[1,128,128], index: 1, kind: input, shape index: {}]
  %s2 = inlined_call_operand.hbm [shape: f32[128,128], index: 2, kind: input, shape index: {}]
  %s3 = inlined_call_operand.vmem [shape: f32[1,128], index: 3, kind: input, shape index: {}]
  %s4 = inlined_call_operand.hbm [shape: f32[128,256], index: 4, kind: input, shape index: {}]
  %s5 = inlined_call_operand.vmem [shape: f32[1,256], index: 5, kind: input, shape index: {}]
  %s6 = inlined_call_operand.hbm [shape: f32[1,128,128], index: 6, kind: output, shape index: {0}]
  %s7 = inlined_call_operand.hbm [shape: f32[1,128,128], index: 7, kind: output, shape index: {1}]
  %8 = xla_tuple %s6, %s7
  %s9 = sld [smem:[#allocation0]]
  $region62: #{tpu_custom_call.1} parent=0
    _
  %s11 = ssub.s32 1, %s9
  %s12 = scalar_select 0, %s11, %s9
  $region1: #{tpu_custom_call.1} parent=0
    #allocation3 [shape = 'u8[65536]{0}', space=vmem, size = 0x10000, scoped, tag = 'input window, operand 0, single buffered']
    #allocation4 [shape = 's32[1]{0}', space=sflag, size = 0x4, scoped, tag = 'scoped memory for tpu_custom_call.1']
    #allocation5 [shape = 's32[1]{0}', space=sflag, size = 0x4, scoped, tag = 'scoped memory for tpu_custom_call.1']
    #allocation6 [shape = 'u8[65536]{0}', space=vmem, size = 0x10000, scoped, tag = 'input window, operand 1, single buffered']
    #allocation7 [shape = 's32[1]{0}', space=sflag, size = 0x4, scoped, tag = 'scoped memory for tpu_custom_call.1']
    #allocation8 [shape = 'u8[65536]{0}', space=vmem, size = 0x10000, scoped, tag = 'input window, operand 2, single buffered']
    #allocation9 [shape = 'u8[131072]{0}', space=vmem, size = 0x20000, scoped, tag = 'input window, operand 4, single buffered']
    #allocation10 [shape = 's32[1]{0}', space=sflag, size = 0x4, scoped, tag = 'scoped memory for tpu_custom_call.1']
    #allocation11 [shape = 'u8[65536]{0}', space=vmem, size = 0x10000, scoped, tag = 'output window, operand 0, single buffered']
    #allocation12 [shape = 'u8[65536]{0}', space=vmem, size = 0x10000, scoped, tag = 'output window, operand 1, single buffered']
    #allocation13 [shape = 's32[1]{0}', space=sflag, size = 0x4, scoped, tag = 'scoped memory for tpu_custom_call.1']
    %13 = vsyncpa [#allocation4], 0
    %14 = vsyncpa [#allocation7], 0
    %15 = vsyncpa [#allocation10], 0
    %16 = vsyncpa [#allocation5], 0
    %17 = vsyncpa [#allocation13], 0
    // Predicated region
    $region2: #{tpu_custom_call.1} parent=1 // pred_check
      _
    $region3: #{tpu_custom_call.1} parent=1 // pred_check_branch
      %19 = sbr.rel (0) target = $region5
    $region4: #{tpu_custom_call.1} parent=1 // pred_region
      %21 = vsyncadd [#allocation4], 0
      %s22 = sshll.u32 %s0, 4
      %s23 = int_to_ptr.hbm [resolvable:$true] %s22
      %s24 = sshll.u32 [#allocation3], 4
      %s25 = int_to_ptr.vmem [resolvable:$true] %s24
      %30 = dma.hbm_to_vmem [thread:$0]  %s23, 2048, %s25, [#allocation4], 128, 128, 8
    $region5: #{tpu_custom_call.1} parent=1 // pred_fallthru
      _
    // Predicated region
    $region6: #{tpu_custom_call.1} parent=1 // pred_check
      _
    $region7: #{tpu_custom_call.1} parent=1 // pred_check_branch
      %32 = sbr.rel (0) target = $region9
    $region8: #{tpu_custom_call.1} parent=1 // pred_region
      %34 = vsyncadd [#allocation7], 0
      %s35 = sshll.u32 %s1, 4
      %s36 = int_to_ptr.hbm [resolvable:$true] %s35
      %s37 = sshll.u32 [#allocation6], 4
      %s38 = int_to_ptr.vmem [resolvable:$true] %s37
      %43 = dma.hbm_to_vmem [thread:$0]  %s36, 2048, %s38, [#allocation7], 128, 128, 8
    $region9: #{tpu_custom_call.1} parent=1 // pred_fallthru
      _
    // Predicated region
    $region10: #{tpu_custom_call.1} parent=1 // pred_check
      _
    $region11: #{tpu_custom_call.1} parent=1 // pred_check_branch
      %45 = sbr.rel (0) target = $region13
    $region12: #{tpu_custom_call.1} parent=1 // pred_region
      %47 = vsyncadd [#allocation7], 0
      %s48 = sshll.u32 %s2, 4
      %s49 = int_to_ptr.hbm [resolvable:$true] %s48
      %s50 = sshll.u32 [#allocation8], 4
      %s51 = int_to_ptr.vmem [resolvable:$true] %s50
      %56 = dma.hbm_to_vmem [thread:$0]  %s49, 2048, %s51, [#allocation7], 128, 128, 8
    $region13: #{tpu_custom_call.1} parent=1 // pred_fallthru
      _
    // Predicated region
    $region14: #{tpu_custom_call.1} parent=1 // pred_check
      _
    $region15: #{tpu_custom_call.1} parent=1 // pred_check_branch
      %58 = sbr.rel (0) target = $region17
    $region16: #{tpu_custom_call.1} parent=1 // pred_region
      _
    $region17: #{tpu_custom_call.1} parent=1 // pred_fallthru
      _
    // Predicated region
    $region18: #{tpu_custom_call.1} parent=1 // pred_check
      _
    $region19: #{tpu_custom_call.1} parent=1 // pred_check_branch
      %60 = sbr.rel (0) target = $region21
    $region20: #{tpu_custom_call.1} parent=1 // pred_region
      %62 = vsyncadd [#allocation10], 0
      %s63 = sshll.u32 %s4, 4
      %s64 = int_to_ptr.hbm [resolvable:$true] %s63
      %s65 = sshll.u32 [#allocation9], 4
      %s66 = int_to_ptr.vmem [resolvable:$true] %s65
      %71 = dma.hbm_to_vmem [thread:$0]  %s64, 4096, %s66, [#allocation10], 256, 256, 16
    $region21: #{tpu_custom_call.1} parent=1 // pred_fallthru
      _
    // Predicated region
    $region22: #{tpu_custom_call.1} parent=1 // pred_check
      _
    $region23: #{tpu_custom_call.1} parent=1 // pred_check_branch
      %73 = sbr.rel (0) target = $region25
    $region24: #{tpu_custom_call.1} parent=1 // pred_region
      _
    $region25: #{tpu_custom_call.1} parent=1 // pred_fallthru
      _
    // Predicated region
    $region26: #{tpu_custom_call.1} parent=1 // pred_check
      _
    $region27: #{tpu_custom_call.1} parent=1 // pred_check_branch
      %75 = sbr.rel (0) target = $region29
    $region28: #{tpu_custom_call.1} parent=1 // pred_region
      %77 = dma.done [#allocation4], 2048
    $region29: #{tpu_custom_call.1} parent=1 // pred_fallthru
      _
    // Predicated region
    $region30: #{tpu_custom_call.1} parent=1 // pred_check
      _
    $region31: #{tpu_custom_call.1} parent=1 // pred_check_branch
      %79 = sbr.rel (0) target = $region33
    $region32: #{tpu_custom_call.1} parent=1 // pred_region
      %81 = dma.done [#allocation7], 2048
    $region33: #{tpu_custom_call.1} parent=1 // pred_fallthru
      _
    // Predicated region
    $region34: #{tpu_custom_call.1} parent=1 // pred_check
      _
    $region35: #{tpu_custom_call.1} parent=1 // pred_check_branch
      %83 = sbr.rel (0) target = $region37
    $region36: #{tpu_custom_call.1} parent=1 // pred_region
      %85 = dma.done [#allocation7], 2048
    $region37: #{tpu_custom_call.1} parent=1 // pred_fallthru
      _
    // Predicated region
    $region38: #{tpu_custom_call.1} parent=1 // pred_check
      _
    $region39: #{tpu_custom_call.1} parent=1 // pred_check_branch
      %87 = sbr.rel (0) target = $region41
    $region40: #{tpu_custom_call.1} parent=1 // pred_region
      %89 = dma.done [#allocation10], 4096
    $region41: #{tpu_custom_call.1} parent=1 // pred_fallthru
      _
    %p90 = scmp.eq.s32.totalorder 0, 0
    // Predicated region
    $region42: #{tpu_custom_call.1} parent=1 // pred_check
      %p91 = pneg %p90
    $region43: #{tpu_custom_call.1} parent=1 // pred_check_branch
      %93 = sbr.rel (%p91) target = $region45
    $region44: #{tpu_custom_call.1} parent=1 // pred_region
      %v94 = vld [vmem:[#allocation3] sm:$0xff]
      %v95 = vld [vmem:[#allocation3 + $0x8] sm:$0xff]
      %v96 = vld [vmem:[#allocation3 + $0x10] sm:$0xff]
      %v97 = vld [vmem:[#allocation3 + $0x18] sm:$0xff]
      %v98 = vld [vmem:[#allocation3 + $0x20] sm:$0xff]
      %v99 = vld [vmem:[#allocation3 + $0x28] sm:$0xff]
      %v100 = vld [vmem:[#allocation3 + $0x30] sm:$0xff]
      %v101 = vld [vmem:[#allocation3 + $0x38] sm:$0xff]
      %v102 = vld [vmem:[#allocation3 + $0x40] sm:$0xff]
      %v103 = vld [vmem:[#allocation3 + $0x48] sm:$0xff]
      %v104 = vld [vmem:[#allocation3 + $0x50] sm:$0xff]
      %v105 = vld [vmem:[#allocation3 + $0x58] sm:$0xff]
      %v106 = vld [vmem:[#allocation3 + $0x60] sm:$0xff]
      %v107 = vld [vmem:[#allocation3 + $0x68] sm:$0xff]
      %v108 = vld [vmem:[#allocation3 + $0x70] sm:$0xff]
      %v109 = vld [vmem:[#allocation3 + $0x78] sm:$0xff]
      %v110 = vld [vmem:[#allocation8] sm:$0xff]
      %v111 = vld [vmem:[#allocation8 + $0x8] sm:$0xff]
      %v112 = vld [vmem:[#allocation8 + $0x10] sm:$0xff]
      %v113 = vld [vmem:[#allocation8 + $0x18] sm:$0xff]
      %v114 = vld [vmem:[#allocation8 + $0x20] sm:$0xff]
      %v115 = vld [vmem:[#allocation8 + $0x28] sm:$0xff]
      %v116 = vld [vmem:[#allocation8 + $0x30] sm:$0xff]
      %v117 = vld [vmem:[#allocation8 + $0x38] sm:$0xff]
      %v118 = vld [vmem:[#allocation8 + $0x40] sm:$0xff]
      %v119 = vld [vmem:[#allocation8 + $0x48] sm:$0xff]
      %v120 = vld [vmem:[#allocation8 + $0x50] sm:$0xff]
      %v121 = vld [vmem:[#allocation8 + $0x58] sm:$0xff]
      %v122 = vld [vmem:[#allocation8 + $0x60] sm:$0xff]
      %v123 = vld [vmem:[#allocation8 + $0x68] sm:$0xff]
      %v124 = vld [vmem:[#allocation8 + $0x70] sm:$0xff]
      %v125 = vld [vmem:[#allocation8 + $0x78] sm:$0xff]
      %v126 = vld [vmem:[%s3] sm:$0x1]
      %v128 = vperm.slane %v126, 0
      %130 = vmatpush.msra.mxu0 %v125
      %131 = vmatpush.msra.mxu0 %v124
      %132 = vmatpush.msra.mxu0 %v123
      %133 = vmatpush.msra.mxu0 %v122
      %134 = vmatpush.msra.mxu0 %v121
      %135 = vmatpush.msra.mxu0 %v120
      %136 = vmatpush.msra.mxu0 %v119
      %137 = vmatpush.msra.mxu0 %v118
      %138 = vmatpush.msra.mxu0 %v117
      %139 = vmatpush.msra.mxu0 %v116
      %140 = vmatpush.msra.mxu0 %v115
      %141 = vmatpush.msra.mxu0 %v114
      %142 = vmatpush.msra.mxu0 %v113
      %143 = vmatpush.msra.mxu0 %v112
      %144 = vmatpush.msra.mxu0 %v111
      %145 = vmatpush.msra.mxu0 %v110
      %146 = vmatmul.f32.gmra.mxu0 %v94
      %v147 = vpop.f32.mrf.mxu0
      %v148 = vadd.f32 %v128, %v147
      %149 = vmatmul.f32.gmra.mxu0 %v95
      %v150 = vpop.f32.mrf.mxu0
      %v151 = vadd.f32 %v128, %v150
      %152 = vmatmul.f32.gmra.mxu0 %v96
      %v153 = vpop.f32.mrf.mxu0
      %v154 = vadd.f32 %v128, %v153
      %155 = vmatmul.f32.gmra.mxu0 %v97
      %v156 = vpop.f32.mrf.mxu0
      %v157 = vadd.f32 %v128, %v156
      %158 = vmatmul.f32.gmra.mxu0 %v98
      %v159 = vpop.f32.mrf.mxu0
      %v160 = vadd.f32 %v128, %v159
      %161 = vmatmul.f32.gmra.mxu0 %v99
      %v162 = vpop.f32.mrf.mxu0
      %v163 = vadd.f32 %v128, %v162
      %164 = vmatmul.f32.gmra.mxu0 %v100
      %v165 = vpop.f32.mrf.mxu0
      %v166 = vadd.f32 %v128, %v165
      %167 = vmatmul.f32.gmra.mxu0 %v101
      %v168 = vpop.f32.mrf.mxu0
      %v169 = vadd.f32 %v128, %v168
      %170 = vmatmul.f32.gmra.mxu0 %v102
      %v171 = vpop.f32.mrf.mxu0
      %v172 = vadd.f32 %v128, %v171
      %173 = vmatmul.f32.gmra.mxu0 %v103
      %v174 = vpop.f32.mrf.mxu0
      %v175 = vadd.f32 %v128, %v174
      %176 = vmatmul.f32.gmra.mxu0 %v104
      %v177 = vpop.f32.mrf.mxu0
      %v178 = vadd.f32 %v128, %v177
      %179 = vmatmul.f32.gmra.mxu0 %v105
      %v180 = vpop.f32.mrf.mxu0
      %v181 = vadd.f32 %v128, %v180
      %182 = vmatmul.f32.gmra.mxu0 %v106
      %v183 = vpop.f32.mrf.mxu0
      %v184 = vadd.f32 %v128, %v183
      %185 = vmatmul.f32.gmra.mxu0 %v107
      %v186 = vpop.f32.mrf.mxu0
      %v187 = vadd.f32 %v128, %v186
      %188 = vmatmul.f32.gmra.mxu0 %v108
      %v189 = vpop.f32.mrf.mxu0
      %v190 = vadd.f32 %v128, %v189
      %191 = vmatmul.f32.gmra.mxu0 %v109
      %v192 = vpop.f32.mrf.mxu0
      %v193 = vadd.f32 %v128, %v192
      %194 = vdwg.mxu0
      %v195 = vmul.f32 %v148, 0.17677669
      %v196 = vmul.f32 %v151, 0.17677669
      %v197 = vmul.f32 %v154, 0.17677669
      %v198 = vmul.f32 %v157, 0.17677669
      %v199 = vmul.f32 %v160, 0.17677669
      %v200 = vmul.f32 %v163, 0.17677669
      %v201 = vmul.f32 %v166, 0.17677669
      %v202 = vmul.f32 %v169, 0.17677669
      %v203 = vmul.f32 %v172, 0.17677669
      %v204 = vmul.f32 %v175, 0.17677669
      %v205 = vmul.f32 %v178, 0.17677669
      %v206 = vmul.f32 %v181, 0.17677669
      %v207 = vmul.f32 %v184, 0.17677669
      %v208 = vmul.f32 %v187, 0.17677669
      %v209 = vmul.f32 %v190, 0.17677669
      %v210 = vmul.f32 %v193, 0.17677669
      %211 = vst [vmem:[#allocation2] sm:$0xff] %v195
      %212 = vst [vmem:[#allocation2 + $0x8] sm:$0xff] %v196
      %213 = vst [vmem:[#allocation2 + $0x10] sm:$0xff] %v197
      %214 = vst [vmem:[#allocation2 + $0x18] sm:$0xff] %v198
      %215 = vst [vmem:[#allocation2 + $0x20] sm:$0xff] %v199
      %216 = vst [vmem:[#allocation2 + $0x28] sm:$0xff] %v200
      %217 = vst [vmem:[#allocation2 + $0x30] sm:$0xff] %v201
      %218 = vst [vmem:[#allocation2 + $0x38] sm:$0xff] %v202
      %219 = vst [vmem:[#allocation2 + $0x40] sm:$0xff] %v203
      %220 = vst [vmem:[#allocation2 + $0x48] sm:$0xff] %v204
      %221 = vst [vmem:[#allocation2 + $0x50] sm:$0xff] %v205
      %222 = vst [vmem:[#allocation2 + $0x58] sm:$0xff] %v206
      %223 = vst [vmem:[#allocation2 + $0x60] sm:$0xff] %v207
      %224 = vst [vmem:[#allocation2 + $0x68] sm:$0xff] %v208
      %225 = vst [vmem:[#allocation2 + $0x70] sm:$0xff] %v209
      %226 = vst [vmem:[#allocation2 + $0x78] sm:$0xff] %v210
      %227 = vst [vmem:[#allocation11] sm:$0xff] 0.0
      %228 = vst [vmem:[#allocation11 + $0x8] sm:$0xff] 0.0
      %229 = vst [vmem:[#allocation11 + $0x10] sm:$0xff] 0.0
      %230 = vst [vmem:[#allocation11 + $0x18] sm:$0xff] 0.0
      %231 = vst [vmem:[#allocation11 + $0x20] sm:$0xff] 0.0
      %232 = vst [vmem:[#allocation11 + $0x28] sm:$0xff] 0.0
      %233 = vst [vmem:[#allocation11 + $0x30] sm:$0xff] 0.0
      %234 = vst [vmem:[#allocation11 + $0x38] sm:$0xff] 0.0
      %235 = vst [vmem:[#allocation11 + $0x40] sm:$0xff] 0.0
      %236 = vst [vmem:[#allocation11 + $0x48] sm:$0xff] 0.0
      %237 = vst [vmem:[#allocation11 + $0x50] sm:$0xff] 0.0
      %238 = vst [vmem:[#allocation11 + $0x58] sm:$0xff] 0.0
      %239 = vst [vmem:[#allocation11 + $0x60] sm:$0xff] 0.0
      %240 = vst [vmem:[#allocation11 + $0x68] sm:$0xff] 0.0
      %241 = vst [vmem:[#allocation11 + $0x70] sm:$0xff] 0.0
      %242 = vst [vmem:[#allocation11 + $0x78] sm:$0xff] 0.0
    $region45: #{tpu_custom_call.1} parent=1 // pred_fallthru
      _
    %v243 = vld [vmem:[#allocation6] sm:$0xff]
    %v244 = vld [vmem:[#allocation6 + $0x8] sm:$0xff]
    %v245 = vld [vmem:[#allocation6 + $0x10] sm:$0xff]
    %v246 = vld [vmem:[#allocation6 + $0x18] sm:$0xff]
    %v247 = vld [vmem:[#allocation6 + $0x20] sm:$0xff]
    %v248 = vld [vmem:[#allocation6 + $0x28] sm:$0xff]
    %v249 = vld [vmem:[#allocation6 + $0x30] sm:$0xff]
    %v250 = vld [vmem:[#allocation6 + $0x38] sm:$0xff]
    %v251 = vld [vmem:[#allocation6 + $0x40] sm:$0xff]
    %v252 = vld [vmem:[#allocation6 + $0x48] sm:$0xff]
    %v253 = vld [vmem:[#allocation6 + $0x50] sm:$0xff]
    %v254 = vld [vmem:[#allocation6 + $0x58] sm:$0xff]
    %v255 = vld [vmem:[#allocation6 + $0x60] sm:$0xff]
    %v256 = vld [vmem:[#allocation6 + $0x68] sm:$0xff]
    %v257 = vld [vmem:[#allocation6 + $0x70] sm:$0xff]
    %v258 = vld [vmem:[#allocation6 + $0x78] sm:$0xff]
    %v259 = vld [vmem:[#allocation9] sm:$0xff]
    %v260 = vld [vmem:[#allocation9 + $0x8] sm:$0xff]
    %v261 = vld [vmem:[#allocation9 + $0x10] sm:$0xff]
    %v262 = vld [vmem:[#allocation9 + $0x18] sm:$0xff]
    %v263 = vld [vmem:[#allocation9 + $0x20] sm:$0xff]
    %v264 = vld [vmem:[#allocation9 + $0x28] sm:$0xff]
    %v265 = vld [vmem:[#allocation9 + $0x30] sm:$0xff]
    %v266 = vld [vmem:[#allocation9 + $0x38] sm:$0xff]
    %v267 = vld [vmem:[#allocation9 + $0x40] sm:$0xff]
    %v268 = vld [vmem:[#allocation9 + $0x48] sm:$0xff]
    %v269 = vld [vmem:[#allocation9 + $0x50] sm:$0xff]
    %v270 = vld [vmem:[#allocation9 + $0x58] sm:$0xff]
    %v271 = vld [vmem:[#allocation9 + $0x60] sm:$0xff]
    %v272 = vld [vmem:[#allocation9 + $0x68] sm:$0xff]
    %v273 = vld [vmem:[#allocation9 + $0x70] sm:$0xff]
    %v274 = vld [vmem:[#allocation9 + $0x78] sm:$0xff]
    %v275 = vld [vmem:[#allocation9 + $0x80] sm:$0xff]
    %v276 = vld [vmem:[#allocation9 + $0x88] sm:$0xff]
    %v277 = vld [vmem:[#allocation9 + $0x90] sm:$0xff]
    %v278 = vld [vmem:[#allocation9 + $0x98] sm:$0xff]
    %v279 = vld [vmem:[#allocation9 + $0xa0] sm:$0xff]
    %v280 = vld [vmem:[#allocation9 + $0xa8] sm:$0xff]
    %v281 = vld [vmem:[#allocation9 + $0xb0] sm:$0xff]
    %v282 = vld [vmem:[#allocation9 + $0xb8] sm:$0xff]
    %v283 = vld [vmem:[#allocation9 + $0xc0] sm:$0xff]
    %v284 = vld [vmem:[#allocation9 + $0xc8] sm:$0xff]
    %v285 = vld [vmem:[#allocation9 + $0xd0] sm:$0xff]
    %v286 = vld [vmem:[#allocation9 + $0xd8] sm:$0xff]
    %v287 = vld [vmem:[#allocation9 + $0xe0] sm:$0xff]
    %v288 = vld [vmem:[#allocation9 + $0xe8] sm:$0xff]
    %v289 = vld [vmem:[#allocation9 + $0xf0] sm:$0xff]
    %v290 = vld [vmem:[#allocation9 + $0xf8] sm:$0xff]
    %v291 = vld [vmem:[%s5] sm:$0x3]
    %v293 = vperm.slane %v291, 0
    %v294 = vperm.slane %v291, 1
    %297 = vmatpush.msra.mxu0 %v289
    %298 = vmatpush.msra.mxu0 %v287
    %299 = vmatpush.msra.mxu0 %v285
    %300 = vmatpush.msra.mxu0 %v283
    %301 = vmatpush.msra.mxu0 %v281
    %302 = vmatpush.msra.mxu0 %v279
    %303 = vmatpush.msra.mxu0 %v277
    %304 = vmatpush.msra.mxu0 %v275
    %305 = vmatpush.msra.mxu0 %v273
    %306 = vmatpush.msra.mxu0 %v271
    %307 = vmatpush.msra.mxu0 %v269
    %308 = vmatpush.msra.mxu0 %v267
    %309 = vmatpush.msra.mxu0 %v265
    %310 = vmatpush.msra.mxu0 %v263
    %311 = vmatpush.msra.mxu0 %v261
    %312 = vmatpush.msra.mxu0 %v259
    %313 = vmatmul.f32.gmra.mxu0 %v243
    %v314 = vpop.f32.mrf.mxu0
    %v315 = vadd.f32 %v293, %v314
    %316 = vmatmul.f32.gmra.mxu0 %v244
    %v317 = vpop.f32.mrf.mxu0
    %v318 = vadd.f32 %v293, %v317
    %319 = vmatmul.f32.gmra.mxu0 %v245
    %v320 = vpop.f32.mrf.mxu0
    %v321 = vadd.f32 %v293, %v320
    %322 = vmatmul.f32.gmra.mxu0 %v246
    %v323 = vpop.f32.mrf.mxu0
    %v324 = vadd.f32 %v293, %v323
    %325 = vmatmul.f32.gmra.mxu0 %v247
    %v326 = vpop.f32.mrf.mxu0
    %v327 = vadd.f32 %v293, %v326
    %328 = vmatmul.f32.gmra.mxu0 %v248
    %v329 = vpop.f32.mrf.mxu0
    %v330 = vadd.f32 %v293, %v329
    %331 = vmatmul.f32.gmra.mxu0 %v249
    %v332 = vpop.f32.mrf.mxu0
    %v333 = vadd.f32 %v293, %v332
    %334 = vmatmul.f32.gmra.mxu0 %v250
    %v335 = vpop.f32.mrf.mxu0
    %v336 = vadd.f32 %v293, %v335
    %337 = vmatmul.f32.gmra.mxu0 %v251
    %v338 = vpop.f32.mrf.mxu0
    %v339 = vadd.f32 %v293, %v338
    %340 = vmatmul.f32.gmra.mxu0 %v252
    %v341 = vpop.f32.mrf.mxu0
    %v342 = vadd.f32 %v293, %v341
    %343 = vmatmul.f32.gmra.mxu0 %v253
    %v344 = vpop.f32.mrf.mxu0
    %v345 = vadd.f32 %v293, %v344
    %346 = vmatmul.f32.gmra.mxu0 %v254
    %v347 = vpop.f32.mrf.mxu0
    %v348 = vadd.f32 %v293, %v347
    %349 = vmatmul.f32.gmra.mxu0 %v255
    %v350 = vpop.f32.mrf.mxu0
    %v351 = vadd.f32 %v293, %v350
    %352 = vmatmul.f32.gmra.mxu0 %v256
    %v353 = vpop.f32.mrf.mxu0
    %v354 = vadd.f32 %v293, %v353
    %355 = vmatmul.f32.gmra.mxu0 %v257
    %v356 = vpop.f32.mrf.mxu0
    %v357 = vadd.f32 %v293, %v356
    %358 = vmatmul.f32.gmra.mxu0 %v258
    %v359 = vpop.f32.mrf.mxu0
    %v360 = vadd.f32 %v293, %v359
    %361 = vdwg.mxu0
    %362 = vmatpush.msra.mxu0 %v290
    %363 = vmatpush.msra.mxu0 %v288
    %364 = vmatpush.msra.mxu0 %v286
    %365 = vmatpush.msra.mxu0 %v284
    %366 = vmatpush.msra.mxu0 %v282
    %367 = vmatpush.msra.mxu0 %v280
    %368 = vmatpush.msra.mxu0 %v278
    %369 = vmatpush.msra.mxu0 %v276
    %370 = vmatpush.msra.mxu0 %v274
    %371 = vmatpush.msra.mxu0 %v272
    %372 = vmatpush.msra.mxu0 %v270
    %373 = vmatpush.msra.mxu0 %v268
    %374 = vmatpush.msra.mxu0 %v266
    %375 = vmatpush.msra.mxu0 %v264
    %376 = vmatpush.msra.mxu0 %v262
    %377 = vmatpush.msra.mxu0 %v260
    %378 = vmatmul.f32.gmra.mxu0 %v243
    %v379 = vpop.f32.mrf.mxu0
    %v380 = vadd.f32 %v294, %v379
    %381 = vmatmul.f32.gmra.mxu0 %v244
    %v382 = vpop.f32.mrf.mxu0
    %v383 = vadd.f32 %v294, %v382
    %384 = vmatmul.f32.gmra.mxu0 %v245
    %v385 = vpop.f32.mrf.mxu0
    %v386 = vadd.f32 %v294, %v385
    %387 = vmatmul.f32.gmra.mxu0 %v246
    %v388 = vpop.f32.mrf.mxu0
    %v389 = vadd.f32 %v294, %v388
    %390 = vmatmul.f32.gmra.mxu0 %v247
    %v391 = vpop.f32.mrf.mxu0
    %v392 = vadd.f32 %v294, %v391
    %393 = vmatmul.f32.gmra.mxu0 %v248
    %v394 = vpop.f32.mrf.mxu0
    %v395 = vadd.f32 %v294, %v394
    %396 = vmatmul.f32.gmra.mxu0 %v249
    %v397 = vpop.f32.mrf.mxu0
    %v398 = vadd.f32 %v294, %v397
    %399 = vmatmul.f32.gmra.mxu0 %v250
    %v400 = vpop.f32.mrf.mxu0
    %v401 = vadd.f32 %v294, %v400
    %402 = vmatmul.f32.gmra.mxu0 %v251
    %v403 = vpop.f32.mrf.mxu0
    %v404 = vadd.f32 %v294, %v403
    %405 = vmatmul.f32.gmra.mxu0 %v252
    %v406 = vpop.f32.mrf.mxu0
    %v407 = vadd.f32 %v294, %v406
    %408 = vmatmul.f32.gmra.mxu0 %v253
    %v409 = vpop.f32.mrf.mxu0
    %v410 = vadd.f32 %v294, %v409
    %411 = vmatmul.f32.gmra.mxu0 %v254
    %v412 = vpop.f32.mrf.mxu0
    %v413 = vadd.f32 %v294, %v412
    %414 = vmatmul.f32.gmra.mxu0 %v255
    %v415 = vpop.f32.mrf.mxu0
    %v416 = vadd.f32 %v294, %v415
    %417 = vmatmul.f32.gmra.mxu0 %v256
    %v418 = vpop.f32.mrf.mxu0
    %v419 = vadd.f32 %v294, %v418
    %420 = vmatmul.f32.gmra.mxu0 %v257
    %v421 = vpop.f32.mrf.mxu0
    %v422 = vadd.f32 %v294, %v421
    %423 = vmatmul.f32.gmra.mxu0 %v258
    %v424 = vpop.f32.mrf.mxu0
    %v425 = vadd.f32 %v294, %v424
    %426 = vdwg.mxu0
    %v427 = vld [vmem:[#allocation2] sm:$0xff]
    %v428 = vld [vmem:[#allocation2 + $0x8] sm:$0xff]
    %v429 = vld [vmem:[#allocation2 + $0x10] sm:$0xff]
    %v430 = vld [vmem:[#allocation2 + $0x18] sm:$0xff]
    %v431 = vld [vmem:[#allocation2 + $0x20] sm:$0xff]
    %v432 = vld [vmem:[#allocation2 + $0x28] sm:$0xff]
    %v433 = vld [vmem:[#allocation2 + $0x30] sm:$0xff]
    %v434 = vld [vmem:[#allocation2 + $0x38] sm:$0xff]
    %v435 = vld [vmem:[#allocation2 + $0x40] sm:$0xff]
    %v436 = vld [vmem:[#allocation2 + $0x48] sm:$0xff]
    %v437 = vld [vmem:[#allocation2 + $0x50] sm:$0xff]
    %v438 = vld [vmem:[#allocation2 + $0x58] sm:$0xff]
    %v439 = vld [vmem:[#allocation2 + $0x60] sm:$0xff]
    %v440 = vld [vmem:[#allocation2 + $0x68] sm:$0xff]
    %v441 = vld [vmem:[#allocation2 + $0x70] sm:$0xff]
    %v442 = vld [vmem:[#allocation2 + $0x78] sm:$0xff]
    %443 = vmatpush.xpose.msra.mxu0 %v360
    %444 = vmatpush.xpose.msra.mxu0 %v357
    %445 = vmatpush.xpose.msra.mxu0 %v354
    %446 = vmatpush.xpose.msra.mxu0 %v351
    %447 = vmatpush.xpose.msra.mxu0 %v348
    %448 = vmatpush.xpose.msra.mxu0 %v345
    %449 = vmatpush.xpose.msra.mxu0 %v342
    %450 = vmatpush.xpose.msra.mxu0 %v339
    %451 = vmatpush.xpose.msra.mxu0 %v336
    %452 = vmatpush.xpose.msra.mxu0 %v333
    %453 = vmatpush.xpose.msra.mxu0 %v330
    %454 = vmatpush.xpose.msra.mxu0 %v327
    %455 = vmatpush.xpose.msra.mxu0 %v324
    %456 = vmatpush.xpose.msra.mxu0 %v321
    %457 = vmatpush.xpose.msra.mxu0 %v318
    %458 = vmatpush.xpose.msra.mxu0 %v315
    %459 = vmatmul.f32.gmra.mxu0 %v427
    %v460 = vpop.f32.mrf.mxu0
    %v461 = vadd.f32 0.0, %v460
    %462 = vmatmul.f32.gmra.mxu0 %v428
    %v463 = vpop.f32.mrf.mxu0
    %v464 = vadd.f32 0.0, %v463
    %465 = vmatmul.f32.gmra.mxu0 %v429
    %v466 = vpop.f32.mrf.mxu0
    %v467 = vadd.f32 0.0, %v466
    %468 = vmatmul.f32.gmra.mxu0 %v430
    %v469 = vpop.f32.mrf.mxu0
    %v470 = vadd.f32 0.0, %v469
    %471 = vmatmul.f32.gmra.mxu0 %v431
    %v472 = vpop.f32.mrf.mxu0
    %v473 = vadd.f32 0.0, %v472
    %474 = vmatmul.f32.gmra.mxu0 %v432
    %v475 = vpop.f32.mrf.mxu0
    %v476 = vadd.f32 0.0, %v475
    %477 = vmatmul.f32.gmra.mxu0 %v433
    %v478 = vpop.f32.mrf.mxu0
    %v479 = vadd.f32 0.0, %v478
    %480 = vmatmul.f32.gmra.mxu0 %v434
    %v481 = vpop.f32.mrf.mxu0
    %v482 = vadd.f32 0.0, %v481
    %483 = vmatmul.f32.gmra.mxu0 %v435
    %v484 = vpop.f32.mrf.mxu0
    %v485 = vadd.f32 0.0, %v484
    %486 = vmatmul.f32.gmra.mxu0 %v436
    %v487 = vpop.f32.mrf.mxu0
    %v488 = vadd.f32 0.0, %v487
    %489 = vmatmul.f32.gmra.mxu0 %v437
    %v490 = vpop.f32.mrf.mxu0
    %v491 = vadd.f32 0.0, %v490
    %492 = vmatmul.f32.gmra.mxu0 %v438
    %v493 = vpop.f32.mrf.mxu0
    %v494 = vadd.f32 0.0, %v493
    %495 = vmatmul.f32.gmra.mxu0 %v439
    %v496 = vpop.f32.mrf.mxu0
    %v497 = vadd.f32 0.0, %v496
    %498 = vmatmul.f32.gmra.mxu0 %v440
    %v499 = vpop.f32.mrf.mxu0
    %v500 = vadd.f32 0.0, %v499
    %501 = vmatmul.f32.gmra.mxu0 %v441
    %v502 = vpop.f32.mrf.mxu0
    %v503 = vadd.f32 0.0, %v502
    %504 = vmatmul.f32.gmra.mxu0 %v442
    %v505 = vpop.f32.mrf.mxu0
    %v506 = vadd.f32 0.0, %v505
    %507 = vdwg.mxu0
    %v508 = vlaneseq
    %v509 = vshrl.u32 %v508, 7
    %v510 = vadd.s32 %v509, 8
    %v511 = vadd.s32 %v509, 16
    %v512 = vadd.s32 %v509, 24
    %v513 = vadd.s32 %v509, 32
    %v514 = vadd.s32 %v509, 40
    %v515 = vadd.s32 %v509, 48
    %v516 = vadd.s32 %v509, 56
    %v517 = vadd.s32 %v509, 64
    %v518 = vadd.s32 %v509, 72
    %v519 = vadd.s32 %v509, 80
    %v520 = vadd.s32 %v509, 88
    %v521 = vadd.s32 %v509, 96
    %v522 = vadd.s32 %v509, 104
    %v523 = vadd.s32 %v509, 112
    %v524 = vadd.s32 %v509, 120
    %vm525 = vcmp.lt.s32.totalorder %v509, 8
    %vm526 = vcmp.lt.s32.totalorder %v510, 8
    %vm527 = vcmp.lt.s32.totalorder %v511, 8
    %vm528 = vcmp.lt.s32.totalorder %v512, 8
    %vm529 = vcmp.lt.s32.totalorder %v513, 8
    %vm530 = vcmp.lt.s32.totalorder %v514, 8
    %vm531 = vcmp.lt.s32.totalorder %v515, 8
    %vm532 = vcmp.lt.s32.totalorder %v516, 8
    %vm533 = vcmp.lt.s32.totalorder %v517, 8
    %vm534 = vcmp.lt.s32.totalorder %v518, 8
    %vm535 = vcmp.lt.s32.totalorder %v519, 8
    %vm536 = vcmp.lt.s32.totalorder %v520, 8
    %vm537 = vcmp.lt.s32.totalorder %v521, 8
    %vm538 = vcmp.lt.s32.totalorder %v522, 8
    %vm539 = vcmp.lt.s32.totalorder %v523, 8
    %vm540 = vcmp.lt.s32.totalorder %v524, 8
    %v541 = vsel %vm525, %v461, -1e+30
    %v542 = vsel %vm526, %v464, -1e+30
    %v543 = vsel %vm527, %v467, -1e+30
    %v544 = vsel %vm528, %v470, -1e+30
    %v545 = vsel %vm529, %v473, -1e+30
    %v546 = vsel %vm530, %v476, -1e+30
    %v547 = vsel %vm531, %v479, -1e+30
    %v548 = vsel %vm532, %v482, -1e+30
    %v549 = vsel %vm533, %v485, -1e+30
    %v550 = vsel %vm534, %v488, -1e+30
    %v551 = vsel %vm535, %v491, -1e+30
    %v552 = vsel %vm536, %v494, -1e+30
    %v553 = vsel %vm537, %v497, -1e+30
    %v554 = vsel %vm538, %v500, -1e+30
    %v555 = vsel %vm539, %v503, -1e+30
    %v556 = vsel %vm540, %v506, -1e+30
    %v557 = vmax.f32 %v541, %v545
    %v558 = vmax.f32 %v542, %v546
    %v559 = vmax.f32 %v543, %v547
    %v560 = vmax.f32 %v544, %v548
    %v561 = vmax.f32 %v557, %v549
    %v562 = vmax.f32 %v558, %v550
    %v563 = vmax.f32 %v559, %v551
    %v564 = vmax.f32 %v560, %v552
    %v565 = vmax.f32 %v561, %v553
    %v566 = vmax.f32 %v562, %v554
    %v567 = vmax.f32 %v563, %v555
    %v568 = vmax.f32 %v564, %v556
    %v569 = vmax.f32 %v565, %v566
    %v570 = vmax.f32 %v567, %v568
    %v571 = vmax.f32 %v569, %v570
    %v572 = vrot.slane %v571, 4
    %v573 = vmax.f32 %v571, %v572
    %v574 = vrot.slane %v573, 2
    %v575 = vmax.f32 %v573, %v574
    %v576 = vrot.slane %v575, 1
    %v577 = vmax.f32 %v575, %v576
    %v578 = vsub.f32 %v541, %v577
    %v579 = vsub.f32 %v542, %v577
    %v580 = vsub.f32 %v543, %v577
    %v581 = vsub.f32 %v544, %v577
    %v582 = vsub.f32 %v545, %v577
    %v583 = vsub.f32 %v546, %v577
    %v584 = vsub.f32 %v547, %v577
    %v585 = vsub.f32 %v548, %v577
    %v586 = vsub.f32 %v549, %v577
    %v587 = vsub.f32 %v550, %v577
    %v588 = vsub.f32 %v551, %v577
    %v589 = vsub.f32 %v552, %v577
    %v590 = vsub.f32 %v553, %v577
    %v591 = vsub.f32 %v554, %v577
    %v592 = vsub.f32 %v555, %v577
    %v593 = vsub.f32 %v556, %v577
    %v594 = vmul.f32 %v578, 1.442695
    %v595 = vpow.pop %v594
    %v596 = vmul.f32 %v579, 1.442695
    %v597 = vpow.pop %v596
    %v598 = vmul.f32 %v580, 1.442695
    %v599 = vpow.pop %v598
    %v600 = vmul.f32 %v581, 1.442695
    %v601 = vpow.pop %v600
    %v602 = vmul.f32 %v582, 1.442695
    %v603 = vpow.pop %v602
    %v604 = vmul.f32 %v583, 1.442695
    %v605 = vpow.pop %v604
    %v606 = vmul.f32 %v584, 1.442695
    %v607 = vpow.pop %v606
    %v608 = vmul.f32 %v585, 1.442695
    %v609 = vpow.pop %v608
    %v610 = vmul.f32 %v586, 1.442695
    %v611 = vpow.pop %v610
    %v612 = vmul.f32 %v587, 1.442695
    %v613 = vpow.pop %v612
    %v614 = vmul.f32 %v588, 1.442695
    %v615 = vpow.pop %v614
    %v616 = vmul.f32 %v589, 1.442695
    %v617 = vpow.pop %v616
    %v618 = vmul.f32 %v590, 1.442695
    %v619 = vpow.pop %v618
    %v620 = vmul.f32 %v591, 1.442695
    %v621 = vpow.pop %v620
    %v622 = vmul.f32 %v592, 1.442695
    %v623 = vpow.pop %v622
    %v624 = vmul.f32 %v593, 1.442695
    %v625 = vpow.pop %v624
    %v626 = vadd.f32 %v595, %v597
    %v627 = vadd.f32 %v626, %v599
    %v628 = vadd.f32 %v627, %v601
    %v629 = vadd.f32 %v628, %v603
    %v630 = vadd.f32 %v629, %v605
    %v631 = vadd.f32 %v630, %v607
    %v632 = vadd.f32 %v631, %v609
    %v633 = vadd.f32 %v632, %v611
    %v634 = vadd.f32 %v633, %v613
    %v635 = vadd.f32 %v634, %v615
    %v636 = vadd.f32 %v635, %v617
    %v637 = vadd.f32 %v636, %v619
    %v638 = vadd.f32 %v637, %v621
    %v639 = vadd.f32 %v638, %v623
    %v640 = vadd.f32 %v639, %v625
    %v641 = vrot.slane %v640, 4
    %v642 = vadd.f32 %v640, %v641
    %v643 = vrot.slane %v642, 2
    %v644 = vadd.f32 %v642, %v643
    %v645 = vrot.slane %v644, 1
    %v646 = vadd.f32 %v644, %v645
    %v647 = vrcp.pop %v646
    %v648 = vmul.f32 %v646, %v647
    %v649 = vsub.f32 1.0, %v648
    %v650 = vmul.f32 %v647, %v649
    %v651 = vadd.f32 %v647, %v650
    %vm652 = vweird.f32 %v646
    %vm653 = vweird.f32 %v647
    %vm654 = vmor %vm652, %vm653
    %v655 = vsel %vm654, %v647, %v651
    %v656 = vand.u32 2147483647, %v646
    %vm657 = vcmp.eq.f32.partialorder %v656, 8.507059e+37
    %v658 = vand.u32 %v646, 2147483648
    %v659 = vor.u32 1.1754944e-38, %v658
    %v660 = vsel %vm657, %v659, %v655
    %v661 = vmul.f32 %v595, %v660
    %v662 = vmul.f32 %v597, %v660
    %v663 = vmul.f32 %v599, %v660
    %v664 = vmul.f32 %v601, %v660
    %v665 = vmul.f32 %v603, %v660
    %v666 = vmul.f32 %v605, %v660
    %v667 = vmul.f32 %v607, %v660
    %v668 = vmul.f32 %v609, %v660
    %v669 = vmul.f32 %v611, %v660
    %v670 = vmul.f32 %v613, %v660
    %v671 = vmul.f32 %v615, %v660
    %v672 = vmul.f32 %v617, %v660
    %v673 = vmul.f32 %v619, %v660
    %v674 = vmul.f32 %v621, %v660
    %v675 = vmul.f32 %v623, %v660
    %v676 = vmul.f32 %v625, %v660
    %677 = vst [vmem:[#allocation12] sm:$0xff] %v661
    %678 = vst [vmem:[#allocation12 + $0x8] sm:$0xff] %v662
    %679 = vst [vmem:[#allocation12 + $0x10] sm:$0xff] %v663
    %680 = vst [vmem:[#allocation12 + $0x18] sm:$0xff] %v664
    %681 = vst [vmem:[#allocation12 + $0x20] sm:$0xff] %v665
    %682 = vst [vmem:[#allocation12 + $0x28] sm:$0xff] %v666
    %683 = vst [vmem:[#allocation12 + $0x30] sm:$0xff] %v667
    %684 = vst [vmem:[#allocation12 + $0x38] sm:$0xff] %v668
    %685 = vst [vmem:[#allocation12 + $0x40] sm:$0xff] %v669
    %686 = vst [vmem:[#allocation12 + $0x48] sm:$0xff] %v670
    %687 = vst [vmem:[#allocation12 + $0x50] sm:$0xff] %v671
    %688 = vst [vmem:[#allocation12 + $0x58] sm:$0xff] %v672
    %689 = vst [vmem:[#allocation12 + $0x60] sm:$0xff] %v673
    %690 = vst [vmem:[#allocation12 + $0x68] sm:$0xff] %v674
    %691 = vst [vmem:[#allocation12 + $0x70] sm:$0xff] %v675
    %692 = vst [vmem:[#allocation12 + $0x78] sm:$0xff] %v676
    %s693 = smul.u32 0, 128
    %v694 = vstv %s693
    %v695 = vadd.s32 %v509, %v694
    %v696 = vadd.s32 %v510, %v694
    %v697 = vadd.s32 %v511, %v694
    %v698 = vadd.s32 %v512, %v694
    %v699 = vadd.s32 %v513, %v694
    %v700 = vadd.s32 %v514, %v694
    %v701 = vadd.s32 %v515, %v694
    %v702 = vadd.s32 %v516, %v694
    %v703 = vadd.s32 %v517, %v694
    %v704 = vadd.s32 %v518, %v694
    %v705 = vadd.s32 %v519, %v694
    %v706 = vadd.s32 %v520, %v694
    %v707 = vadd.s32 %v521, %v694
    %v708 = vadd.s32 %v522, %v694
    %v709 = vadd.s32 %v523, %v694
    %v710 = vadd.s32 %v524, %v694
    %vm711 = vcmp.lt.s32.totalorder %v695, 8
    %vm712 = vcmp.lt.s32.totalorder %v696, 8
    %vm713 = vcmp.lt.s32.totalorder %v697, 8
    %vm714 = vcmp.lt.s32.totalorder %v698, 8
    %vm715 = vcmp.lt.s32.totalorder %v699, 8
    %vm716 = vcmp.lt.s32.totalorder %v700, 8
    %vm717 = vcmp.lt.s32.totalorder %v701, 8
    %vm718 = vcmp.lt.s32.totalorder %v702, 8
    %vm719 = vcmp.lt.s32.totalorder %v703, 8
    %vm720 = vcmp.lt.s32.totalorder %v704, 8
    %vm721 = vcmp.lt.s32.totalorder %v705, 8
    %vm722 = vcmp.lt.s32.totalorder %v706, 8
    %vm723 = vcmp.lt.s32.totalorder %v707, 8
    %vm724 = vcmp.lt.s32.totalorder %v708, 8
    %vm725 = vcmp.lt.s32.totalorder %v709, 8
    %vm726 = vcmp.lt.s32.totalorder %v710, 8
    %v727 = vsel %vm711, %v380, 0.0
    %v728 = vsel %vm712, %v383, 0.0
    %v729 = vsel %vm713, %v386, 0.0
    %v730 = vsel %vm714, %v389, 0.0
    %v731 = vsel %vm715, %v392, 0.0
    %v732 = vsel %vm716, %v395, 0.0
    %v733 = vsel %vm717, %v398, 0.0
    %v734 = vsel %vm718, %v401, 0.0
    %v735 = vsel %vm719, %v404, 0.0
    %v736 = vsel %vm720, %v407, 0.0
    %v737 = vsel %vm721, %v410, 0.0
    %v738 = vsel %vm722, %v413, 0.0
    %v739 = vsel %vm723, %v416, 0.0
    %v740 = vsel %vm724, %v419, 0.0
    %v741 = vsel %vm725, %v422, 0.0
    %v742 = vsel %vm726, %v425, 0.0
    %v743 = vld [vmem:[#allocation11] sm:$0xff]
    %v744 = vld [vmem:[#allocation11 + $0x8] sm:$0xff]
    %v745 = vld [vmem:[#allocation11 + $0x10] sm:$0xff]
    %v746 = vld [vmem:[#allocation11 + $0x18] sm:$0xff]
    %v747 = vld [vmem:[#allocation11 + $0x20] sm:$0xff]
    %v748 = vld [vmem:[#allocation11 + $0x28] sm:$0xff]
    %v749 = vld [vmem:[#allocation11 + $0x30] sm:$0xff]
    %v750 = vld [vmem:[#allocation11 + $0x38] sm:$0xff]
    %v751 = vld [vmem:[#allocation11 + $0x40] sm:$0xff]
    %v752 = vld [vmem:[#allocation11 + $0x48] sm:$0xff]
    %v753 = vld [vmem:[#allocation11 + $0x50] sm:$0xff]
    %v754 = vld [vmem:[#allocation11 + $0x58] sm:$0xff]
    %v755 = vld [vmem:[#allocation11 + $0x60] sm:$0xff]
    %v756 = vld [vmem:[#allocation11 + $0x68] sm:$0xff]
    %v757 = vld [vmem:[#allocation11 + $0x70] sm:$0xff]
    %v758 = vld [vmem:[#allocation11 + $0x78] sm:$0xff]
    %759 = vmatpush.msra.mxu0 %v742
    %760 = vmatpush.msra.mxu0 %v741
    %761 = vmatpush.msra.mxu0 %v740
    %762 = vmatpush.msra.mxu0 %v739
    %763 = vmatpush.msra.mxu0 %v738
    %764 = vmatpush.msra.mxu0 %v737
    %765 = vmatpush.msra.mxu0 %v736
    %766 = vmatpush.msra.mxu0 %v735
    %767 = vmatpush.msra.mxu0 %v734
    %768 = vmatpush.msra.mxu0 %v733
    %769 = vmatpush.msra.mxu0 %v732
    %770 = vmatpush.msra.mxu0 %v731
    %771 = vmatpush.msra.mxu0 %v730
    %772 = vmatpush.msra.mxu0 %v729
    %773 = vmatpush.msra.mxu0 %v728
    %774 = vmatpush.msra.mxu0 %v727
    %775 = vmatmul.f32.gmra.mxu0 %v661
    %v776 = vpop.f32.mrf.mxu0
    %v777 = vadd.f32 0.0, %v776
    %778 = vmatmul.f32.gmra.mxu0 %v662
    %v779 = vpop.f32.mrf.mxu0
    %v780 = vadd.f32 0.0, %v779
    %781 = vmatmul.f32.gmra.mxu0 %v663
    %v782 = vpop.f32.mrf.mxu0
    %v783 = vadd.f32 0.0, %v782
    %784 = vmatmul.f32.gmra.mxu0 %v664
    %v785 = vpop.f32.mrf.mxu0
    %v786 = vadd.f32 0.0, %v785
    %787 = vmatmul.f32.gmra.mxu0 %v665
    %v788 = vpop.f32.mrf.mxu0
    %v789 = vadd.f32 0.0, %v788
    %790 = vmatmul.f32.gmra.mxu0 %v666
    %v791 = vpop.f32.mrf.mxu0
    %v792 = vadd.f32 0.0, %v791
    %793 = vmatmul.f32.gmra.mxu0 %v667
    %v794 = vpop.f32.mrf.mxu0
    %v795 = vadd.f32 0.0, %v794
    %796 = vmatmul.f32.gmra.mxu0 %v668
    %v797 = vpop.f32.mrf.mxu0
    %v798 = vadd.f32 0.0, %v797
    %799 = vmatmul.f32.gmra.mxu0 %v669
    %v800 = vpop.f32.mrf.mxu0
    %v801 = vadd.f32 0.0, %v800
    %802 = vmatmul.f32.gmra.mxu0 %v670
    %v803 = vpop.f32.mrf.mxu0
    %v804 = vadd.f32 0.0, %v803
    %805 = vmatmul.f32.gmra.mxu0 %v671
    %v806 = vpop.f32.mrf.mxu0
    %v807 = vadd.f32 0.0, %v806
    %808 = vmatmul.f32.gmra.mxu0 %v672
    %v809 = vpop.f32.mrf.mxu0
    %v810 = vadd.f32 0.0, %v809
    %811 = vmatmul.f32.gmra.mxu0 %v673
    %v812 = vpop.f32.mrf.mxu0
    %v813 = vadd.f32 0.0, %v812
    %814 = vmatmul.f32.gmra.mxu0 %v674
    %v815 = vpop.f32.mrf.mxu0
    %v816 = vadd.f32 0.0, %v815
    %817 = vmatmul.f32.gmra.mxu0 %v675
    %v818 = vpop.f32.mrf.mxu0
    %v819 = vadd.f32 0.0, %v818
    %820 = vmatmul.f32.gmra.mxu0 %v676
    %v821 = vpop.f32.mrf.mxu0
    %v822 = vadd.f32 0.0, %v821
    %823 = vdwg.mxu0
    %v824 = vadd.f32 %v743, %v777
    %v825 = vadd.f32 %v744, %v780
    %v826 = vadd.f32 %v745, %v783
    %v827 = vadd.f32 %v746, %v786
    %v828 = vadd.f32 %v747, %v789
    %v829 = vadd.f32 %v748, %v792
    %v830 = vadd.f32 %v749, %v795
    %v831 = vadd.f32 %v750, %v798
    %v832 = vadd.f32 %v751, %v801
    %v833 = vadd.f32 %v752, %v804
    %v834 = vadd.f32 %v753, %v807
    %v835 = vadd.f32 %v754, %v810
    %v836 = vadd.f32 %v755, %v813
    %v837 = vadd.f32 %v756, %v816
    %v838 = vadd.f32 %v757, %v819
    %v839 = vadd.f32 %v758, %v822
    %840 = vst [vmem:[#allocation11] sm:$0xff] %v824
    %841 = vst [vmem:[#allocation11 + $0x8] sm:$0xff] %v825
    %842 = vst [vmem:[#allocation11 + $0x10] sm:$0xff] %v826
    %843 = vst [vmem:[#allocation11 + $0x18] sm:$0xff] %v827
    %844 = vst [vmem:[#allocation11 + $0x20] sm:$0xff] %v828
    %845 = vst [vmem:[#allocation11 + $0x28] sm:$0xff] %v829
    %846 = vst [vmem:[#allocation11 + $0x30] sm:$0xff] %v830
    %847 = vst [vmem:[#allocation11 + $0x38] sm:$0xff] %v831
    %848 = vst [vmem:[#allocation11 + $0x40] sm:$0xff] %v832
    %849 = vst [vmem:[#allocation11 + $0x48] sm:$0xff] %v833
    %850 = vst [vmem:[#allocation11 + $0x50] sm:$0xff] %v834
    %851 = vst [vmem:[#allocation11 + $0x58] sm:$0xff] %v835
    %852 = vst [vmem:[#allocation11 + $0x60] sm:$0xff] %v836
    %853 = vst [vmem:[#allocation11 + $0x68] sm:$0xff] %v837
    %854 = vst [vmem:[#allocation11 + $0x70] sm:$0xff] %v838
    %855 = vst [vmem:[#allocation11 + $0x78] sm:$0xff] %v839
    // Predicated region
    $region46: #{tpu_custom_call.1} parent=1 // pred_check
      _
    $region47: #{tpu_custom_call.1} parent=1 // pred_check_branch
      %857 = sbr.rel (0) target = $region49
    $region48: #{tpu_custom_call.1} parent=1 // pred_region
      %859 = vsyncadd [#allocation5], 0
      %s860 = sshll.u32 [#allocation11], 4
      %s861 = int_to_ptr.vmem [resolvable:$true] %s860
      %s862 = sshll.u32 %s6, 4
      %s863 = int_to_ptr.hbm [resolvable:$true] %s862
      %868 = dma.vmem_to_hbm [thread:$0]  %s861, 2048, %s863, [#allocation5], 128, 128, 8
    $region49: #{tpu_custom_call.1} parent=1 // pred_fallthru
      _
    // Predicated region
    $region50: #{tpu_custom_call.1} parent=1 // pred_check
      _
    $region51: #{tpu_custom_call.1} parent=1 // pred_check_branch
      %870 = sbr.rel (0) target = $region53
    $region52: #{tpu_custom_call.1} parent=1 // pred_region
      %872 = vsyncadd [#allocation13], 0
      %s873 = sshll.u32 [#allocation12], 4
      %s874 = int_to_ptr.vmem [resolvable:$true] %s873
      %s875 = sshll.u32 %s7, 4
      %s876 = int_to_ptr.hbm [resolvable:$true] %s875
      %881 = dma.vmem_to_hbm [thread:$0]  %s874, 2048, %s876, [#allocation13], 128, 128, 8
    $region53: #{tpu_custom_call.1} parent=1 // pred_fallthru
      _
    // Predicated region
    $region54: #{tpu_custom_call.1} parent=1 // pred_check
      _
    $region55: #{tpu_custom_call.1} parent=1 // pred_check_branch
      %883 = sbr.rel (0) target = $region57
    $region56: #{tpu_custom_call.1} parent=1 // pred_region
      %885 = dma.done [#allocation5], 2048
    $region57: #{tpu_custom_call.1} parent=1 // pred_fallthru
      _
    // Predicated region
    $region58: #{tpu_custom_call.1} parent=1 // pred_check
      _
    $region59: #{tpu_custom_call.1} parent=1 // pred_check_branch
      %887 = sbr.rel (0) target = $region61
    $region60: #{tpu_custom_call.1} parent=1 // pred_region
      %889 = dma.done [#allocation13], 2048
    $region61: #{tpu_custom_call.1} parent=1 // pred_fallthru
      _
    %890 = vsyncpa [#allocation4], 1
    %891 = vsyncpa [#allocation7], 1
    %892 = vsyncpa [#allocation10], 1
    %893 = vsyncpa [#allocation5], 1
    %894 = vsyncpa [#allocation13], 1

</llo_original>
